<compile_context>
chip_gen: v6e
topology: v6e:2x2x1
jax: 0.10.0
libtpu: 0.0.40
codegen_flags: <defaults>
</compile_context>

<pallas_src>
import jax
import jax.numpy as jnp
from jax.experimental import pallas as pl
from jax.experimental.pallas import tpu as pltpu


_MMD_BANDWIDTHS = (10.0, 15.0, 20.0, 50.0)


def _pick_row_tile(num_rows, row_bytes, max_block_bytes=2 * 1024 * 1024):
    """Largest sublane-aligned row tile dividing num_rows whose block fits the budget.

    2 MiB per block keeps (2 inputs x 2 pipeline buffers) well under the default
    scoped VMEM limit on every generation (16 MiB v5e, 32 MiB v6e/v7x) and far
    below v7x's 64 MiB physical VMEM.
    """
    divisors = [t for t in (1024, 512, 256, 128, 64, 32, 16, 8) if num_rows % t == 0]
    if not divisors:
        return num_rows                      # odd row count: single full block
    for tm in divisors:
        if tm * row_bytes <= max_block_bytes:
            return tm
    return divisors[-1]


# --------------------------------------------------------------------------
# Kernel 1: CLIP base loss = (CE(logits_img, gt) + CE(logits_txt, gt)) / 2
# Row-tiled softmax cross-entropy with a resident scalar accumulator.
# --------------------------------------------------------------------------
def _clip_ce_kernel(img_ref, txt_ref, gt_ref, out_ref, acc_ref):
    i = pl.program_id(0)

    @pl.when(i == 0)
    def _init():
        acc_ref[...] = jnp.zeros_like(acc_ref)

    tm, B = img_ref.shape
    labels = gt_ref[...]                                        # (tm, 1) int32
    col_ids = jax.lax.broadcasted_iota(jnp.int32, (tm, B), 1)   # global column ids
    onehot = col_ids == labels                                  # built once, reused twice

    def ce_partial(block_ref):
        logits = block_ref[...].astype(jnp.float32)             # upcast on load
        m = jnp.max(logits, axis=-1, keepdims=True)
        lse = m + jnp.log(jnp.sum(jnp.exp(logits - m), axis=-1, keepdims=True))
        picked = jnp.sum(jnp.where(onehot, logits, 0.0), axis=-1, keepdims=True)
        return jnp.sum(lse - picked, axis=0, keepdims=True)     # (1, 1) partial sum

    acc_ref[...] += ce_partial(img_ref) + ce_partial(txt_ref)

    @pl.when(i == pl.num_programs(0) - 1)
    def _finalize():
        out_ref[...] = acc_ref[...] * (0.5 / B)


def clip_base_loss(logits_per_image, logits_per_text, ground_truth):
    B = logits_per_image.shape[0]
    itemsize = jnp.dtype(logits_per_image.dtype).itemsize
    tm = _pick_row_tile(B, B * itemsize)
    gt = ground_truth.astype(jnp.int32).reshape(B, 1)
    out = pl.pallas_call(
        _clip_ce_kernel,
        out_shape=jax.ShapeDtypeStruct((1, 1), jnp.float32),
        grid=(B // tm,),
        in_specs=[
            pl.BlockSpec((tm, B), lambda i: (i, 0)),    # logits_per_image row block
            pl.BlockSpec((tm, B), lambda i: (i, 0)),    # logits_per_text row block
            pl.BlockSpec((tm, 1), lambda i: (i, 0)),    # labels for this row block
        ],
        out_specs=pl.BlockSpec((1, 1), lambda i: (0, 0)),
        scratch_shapes=[pltpu.VMEM((1, 1), jnp.float32)],
        # The row axis carries the scalar accumulator (output block resident across
        # it), so it must be "arbitrary"; the CE pass is mem-bound so megacore
        # sharding would not help here anyway.
        compiler_params=pltpu.CompilerParams(dimension_semantics=("arbitrary",)),
    )(logits_per_image, logits_per_text, gt)
    return out[0, 0]


# --------------------------------------------------------------------------
# Kernel 2: Gaussian-kernel MMD between x and EVERY row of y_groups, fused
# into one launch.  grid = (group, row-block of the N x N distance matrix).
#   MMD_g = mean_ij sum_a [exp(-.5 dxx/a) + exp(-.5 dyy/a) - 2 exp(-.5 dxy/a)]
# The x-vs-x sum is group independent and computed only while g == 0.
# --------------------------------------------------------------------------
def _mmd_grouped_kernel(xc_ref, xr_ref, yc_ref, yr_ref, out_ref, kxx_ref, grp_ref):
    g = pl.program_id(0)
    r = pl.program_id(1)
    last_r = pl.num_programs(1) - 1
    n = xr_ref.shape[1]

    xc = xc_ref[...].astype(jnp.float32)      # (tm, 1) row block of x
    xr = xr_ref[...].astype(jnp.float32)      # (1, N)  full x row (lane dense)
    yc = yc_ref[0].astype(jnp.float32)        # (tm, 1) row block of group g
    yr = yr_ref[0].astype(jnp.float32)        # (1, N)  full group-g row

    def gauss_sum(col, row):
        d = (col - row) ** 2                  # (tm, N) pairwise squared distances
        acc = jnp.zeros_like(d)
        for a in _MMD_BANDWIDTHS:
            acc = acc + jnp.exp(d * (-0.5 / a))   # folded constant: one mul + one exp
        return jnp.sum(jnp.sum(acc, axis=-1, keepdims=True), axis=0, keepdims=True)

    @pl.when((g == 0) & (r == 0))
    def _init_kxx():
        kxx_ref[...] = jnp.zeros_like(kxx_ref)

    @pl.when(g == 0)                           # x-vs-x term shared by all groups
    def _acc_kxx():
        kxx_ref[...] += gauss_sum(xc, xr)

    @pl.when(r == 0)
    def _init_grp():
        grp_ref[...] = jnp.zeros_like(grp_ref)

    grp_ref[...] += gauss_sum(yc, yr) - 2.0 * gauss_sum(xc, yr)

    @pl.when(r == last_r)
    def _finalize():
        out_ref[0] = (kxx_ref[...] + grp_ref[...]) * (1.0 / (n * n))


def mmd_gauss_grouped(x, y_groups):
    """Gaussian-kernel MMD(x, y_g) for every row y_g of y_groups, in one launch."""
    G, N = y_groups.shape
    itemsize = max(jnp.dtype(x.dtype).itemsize, jnp.dtype(y_groups.dtype).itemsize)
    tm = _pick_row_tile(N, N * itemsize)
    x_col = x.reshape(N, 1)
    x_row = x.reshape(1, N)
    y_cols = y_groups.reshape(G, N, 1)
    y_rows = y_groups.reshape(G, 1, N)
    out = pl.pallas_call(
        _mmd_grouped_kernel,
        out_shape=jax.ShapeDtypeStruct((G, 1, 1), jnp.float32),
        grid=(G, N // tm),
        in_specs=[
            pl.BlockSpec((tm, 1), lambda g, r: (r, 0)),        # x column block
            pl.BlockSpec((1, N), lambda g, r: (0, 0)),         # x full row
            pl.BlockSpec((1, tm, 1), lambda g, r: (g, r, 0)),  # y_g column block
            pl.BlockSpec((1, 1, N), lambda g, r: (g, 0, 0)),   # y_g full row
        ],
        out_specs=pl.BlockSpec((1, 1, 1), lambda g, r: (g, 0, 0)),
        scratch_shapes=[pltpu.VMEM((1, 1), jnp.float32),       # shared x-vs-x sum
                        pltpu.VMEM((1, 1), jnp.float32)],      # per-group accumulator
        # Both axes carry cross-iteration scratch state (kxx reuse across g,
        # row-block reduction across r) -> "arbitrary".
        compiler_params=pltpu.CompilerParams(
            dimension_semantics=("arbitrary", "arbitrary")),
    )(x_col, x_row, y_cols, y_rows)
    return out.reshape(G)


# --------------------------------------------------------------------------
# Module wrapper reproducing FairCLIPPlusLoss.forward semantics
# --------------------------------------------------------------------------
class FairCLIPPlusLoss:
    def __init__(self, fairness_weight, attributes):
        self.fairness_weight = fairness_weight
        self.attributes = attributes
        # loss_img / loss_txt (CrossEntropyLoss) and distance_loss (mmd_gauss)
        # are fused into the Pallas kernels above.

    def __call__(self, logits_per_image, logits_per_text, features_per_attribute,
                 correlations_with_batch, ground_truth):
        base_loss = clip_base_loss(logits_per_image, logits_per_text, ground_truth)
        if self.fairness_weight == 0:
            return base_loss

        # Stack every (attribute, group) similarity vector so one fused Pallas
        # launch computes all MMDs (x = correlations_with_batch is shared).
        specs = []        # (attribute_name, number_of_groups), in iteration order
        group_vecs = []
        for attribute_name, attr_weight in self.attributes.items():
            if attr_weight == 0:
                continue
            g_list = list(features_per_attribute[attribute_name].values())
            specs.append((attribute_name, len(g_list)))
            group_vecs.extend(g_list)

        distance_loss = jnp.float32(0.0)
        if group_vecs:
            y_stack = jnp.stack(group_vecs, axis=0)                       # (G, N)
            per_group_mmd = mmd_gauss_grouped(correlations_with_batch, y_stack)
            idx = 0
            for attribute_name, n_groups in specs:
                attr_weight = self.attributes[attribute_name]
                attribute_loss = jnp.float32(0.0)
                for k in range(n_groups):
                    attribute_loss = attribute_loss + per_group_mmd[idx + k]
                    # TODO(synk): reference prints debug info when attribute_loss
                    # leaves [0, 1000]; pure logging, no semantic effect -> skipped.
                    attribute_loss = jnp.nan_to_num(attribute_loss, nan=0.0)
                idx += n_groups
                distance_loss = distance_loss + attribute_loss * attr_weight

        loss = base_loss + self.fairness_weight * distance_loss
        loss = base_loss  # reproduces the reference forward, which overwrites `loss`
        # Return JAX scalars (no float()/item() host syncs); callers that need
        # Python floats can convert outside the hot path.
        return loss, base_loss, distance_loss


# --------------------------------------------------------------------------
# Pure-JAX references (correctness check only)
# --------------------------------------------------------------------------
def _ref_ce(logits, labels):
    lse = jax.nn.logsumexp(logits.astype(jnp.float32), axis=-1)
    picked = jnp.take_along_axis(logits.astype(jnp.float32), labels[:, None], axis=-1)[:, 0]
    return jnp.mean(lse - picked)


def _ref_mmd(x, y):
    dxx = (x[:, None] - x[None, :]) ** 2
    dyy = (y[:, None] - y[None, :]) ** 2
    dxy = (x[:, None] - y[None, :]) ** 2
    acc = 0.0
    for a in _MMD_BANDWIDTHS:
        acc = acc + jnp.exp(-0.5 * dxx / a) + jnp.exp(-0.5 * dyy / a) \
                  - 2.0 * jnp.exp(-0.5 * dxy / a)
    return jnp.mean(acc)


if __name__ == "__main__":
    key = jax.random.PRNGKey(0)
    B = 8
    k1, k2, k3, k4, k5, k6 = jax.random.split(key, 6)

    logits_per_image = jax.random.normal(k1, (B, B), jnp.float32) * 3.0
    logits_per_text = logits_per_image.T
    ground_truth = jnp.arange(B, dtype=jnp.int32)
    correlations_with_batch = jax.random.normal(k2, (B,), jnp.float32)
    features_per_attribute = {
        "race": {
            "group0": jax.random.normal(k3, (B,), jnp.float32),
            "group1": jax.random.normal(k4, (B,), jnp.float32),
        },
        "gender": {
            "group0": jax.random.normal(k5, (B,), jnp.float32),
            "group1": jax.random.normal(k6, (B,), jnp.float32),
        },
    }
    attributes = {"race": 1.0, "gender": 0.5}

    loss_fn = FairCLIPPlusLoss(fairness_weight=1e-5, attributes=attributes)
    loss, base_loss_item, distance_loss_item = loss_fn(
        logits_per_image, logits_per_text, features_per_attribute,
        correlations_with_batch, ground_truth)
    jax.block_until_ready(loss)
    jax.block_until_ready(distance_loss_item)

    # correctness check against pure-JAX reference
    ref_base = 0.5 * (_ref_ce(logits_per_image, ground_truth)
                      + _ref_ce(logits_per_text, ground_truth))
    ref_dist = 0.0
    for attr, w in attributes.items():
        a_loss = 0.0
        for _, g in features_per_attribute[attr].items():
            a_loss = a_loss + _ref_mmd(correlations_with_batch, g)
        ref_dist = ref_dist + a_loss * w
    assert abs(float(base_loss_item) - float(ref_base)) < 1e-4
    assert abs(float(distance_loss_item) - float(ref_dist)) < 1e-4
    assert abs(float(loss) - float(ref_base)) < 1e-4  # forward returns base_loss as loss

    print("KERNEL_OK")
</pallas_src>

<mosaic_0001>
module attributes {stable_mosaic.version = 11 : i64} {
  func.func @_clip_ce_kernel(%arg0: i32, %arg1: memref<8x8xf32, #tpu.memory_space<vmem>>, %arg2: memref<8x8xf32, #tpu.memory_space<vmem>>, %arg3: memref<8x1xi32, #tpu.memory_space<vmem>>, %arg4: memref<1x1xf32, #tpu.memory_space<vmem>>, %arg5: memref<1x1xf32, #tpu.memory_space<vmem>>) attributes {dimension_semantics = [#tpu.dimension_semantics<arbitrary>], iteration_bounds = array<i64: 1>, scalar_prefetch = 0 : i64, scratch_operands = 1 : i64, tpu.core_type = #tpu.core_type<tc>, window_params = [{transform_indices = @transform_0, window_bounds = array<i64: 8, 8>}, {transform_indices = @transform_1, window_bounds = array<i64: 8, 8>}, {transform_indices = @transform_2, window_bounds = array<i64: 8, 1>}, {pipeline_mode = #tpu.pipeline_mode<synchronous>, transform_indices = @transform_3, window_bounds = array<i64: 1, 1>}]} {
    %c0_i32 = arith.constant 0 : i32
    %0 = arith.cmpi eq, %arg0, %c0_i32 : i32
    %1 = arith.extui %0 : i1 to i32
    %c0_i32_0 = arith.constant 0 : i32
    %2 = arith.cmpi ne, %1, %c0_i32_0 : i32
    scf.if %2 {
      %cst_21 = arith.constant 0.000000e+00 : f32
      %48 = vector.broadcast %cst_21 : f32 to vector<1x1xf32>
      %c0_22 = arith.constant 0 : index
      %c0_23 = arith.constant 0 : index
      %49 = vector.load %arg5[%c0_22, %c0_23] : memref<1x1xf32, #tpu.memory_space<vmem>>, vector<1x1xf32>
      tpu.vector_store %arg5[%c0_22, %c0_23], %48 {strides = array<i32>} : memref<1x1xf32, #tpu.memory_space<vmem>>, vector<1x1xf32>,
    } else {
    }
    %c0 = arith.constant 0 : index
    %c0_1 = arith.constant 0 : index
    %3 = vector.load %arg3[%c0, %c0_1] : memref<8x1xi32, #tpu.memory_space<vmem>>, vector<8x1xi32>
    %4 = tpu.iota {dimensions = array<i32: 1>} : vector<8x8xi32>
    %5 = vector.broadcast %3 : vector<8x1xi32> to vector<8x8xi32>
    %6 = arith.cmpi eq, %4, %5 : vector<8x8xi32>
    %c0_2 = arith.constant 0 : index
    %c0_3 = arith.constant 0 : index
    %7 = vector.load %arg5[%c0_2, %c0_3] : memref<1x1xf32, #tpu.memory_space<vmem>>, vector<1x1xf32>
    %c0_4 = arith.constant 0 : index
    %c0_5 = arith.constant 0 : index
    %8 = vector.load %arg1[%c0_4, %c0_5] : memref<8x8xf32, #tpu.memory_space<vmem>>, vector<8x8xf32>
    %cst = arith.constant dense<0xFF800000> : vector<8xf32>
    %9 = vector.multi_reduction <maximumf>, %8, %cst [1] : vector<8x8xf32> to vector<8xf32>
    %10 = vector.shape_cast %9 : vector<8xf32> to vector<8x1xf32>
    %11 = vector.broadcast %10 : vector<8x1xf32> to vector<8x8xf32>
    %12 = arith.subf %8, %11 : vector<8x8xf32>
    %13 = math.exp %12 : vector<8x8xf32>
    %cst_6 = arith.constant dense<0.000000e+00> : vector<8xf32>
    %14 = vector.multi_reduction <add>, %13, %cst_6 [1] : vector<8x8xf32> to vector<8xf32>
    %15 = vector.shape_cast %14 : vector<8xf32> to vector<8x1xf32>
    %16 = math.log %15 : vector<8x1xf32>
    %17 = arith.addf %10, %16 : vector<8x1xf32>
    %cst_7 = arith.constant 0.000000e+00 : f32
    %18 = vector.broadcast %cst_7 : f32 to vector<8x8xf32>
    %19 = arith.select %6, %8, %18 : vector<8x8xi1>, vector<8x8xf32>
    %cst_8 = arith.constant dense<0.000000e+00> : vector<8xf32>
    %20 = vector.multi_reduction <add>, %19, %cst_8 [1] : vector<8x8xf32> to vector<8xf32>
    %21 = vector.shape_cast %20 : vector<8xf32> to vector<8x1xf32>
    %22 = arith.subf %17, %21 : vector<8x1xf32>
    %cst_9 = arith.constant dense<0.000000e+00> : vector<1xf32>
    %23 = vector.multi_reduction <add>, %22, %cst_9 [0] : vector<8x1xf32> to vector<1xf32>
    %24 = vector.shape_cast %23 : vector<1xf32> to vector<1x1xf32>
    %c0_10 = arith.constant 0 : index
    %c0_11 = arith.constant 0 : index
    %25 = vector.load %arg2[%c0_10, %c0_11] : memref<8x8xf32, #tpu.memory_space<vmem>>, vector<8x8xf32>
    %cst_12 = arith.constant dense<0xFF800000> : vector<8xf32>
    %26 = vector.multi_reduction <maximumf>, %25, %cst_12 [1] : vector<8x8xf32> to vector<8xf32>
    %27 = vector.shape_cast %26 : vector<8xf32> to vector<8x1xf32>
    %28 = vector.broadcast %27 : vector<8x1xf32> to vector<8x8xf32>
    %29 = arith.subf %25, %28 : vector<8x8xf32>
    %30 = math.exp %29 : vector<8x8xf32>
    %cst_13 = arith.constant dense<0.000000e+00> : vector<8xf32>
    %31 = vector.multi_reduction <add>, %30, %cst_13 [1] : vector<8x8xf32> to vector<8xf32>
    %32 = vector.shape_cast %31 : vector<8xf32> to vector<8x1xf32>
    %33 = math.log %32 : vector<8x1xf32>
    %34 = arith.addf %27, %33 : vector<8x1xf32>
    %cst_14 = arith.constant 0.000000e+00 : f32
    %35 = vector.broadcast %cst_14 : f32 to vector<8x8xf32>
    %36 = arith.select %6, %25, %35 : vector<8x8xi1>, vector<8x8xf32>
    %cst_15 = arith.constant dense<0.000000e+00> : vector<8xf32>
    %37 = vector.multi_reduction <add>, %36, %cst_15 [1] : vector<8x8xf32> to vector<8xf32>
    %38 = vector.shape_cast %37 : vector<8xf32> to vector<8x1xf32>
    %39 = arith.subf %34, %38 : vector<8x1xf32>
    %cst_16 = arith.constant dense<0.000000e+00> : vector<1xf32>
    %40 = vector.multi_reduction <add>, %39, %cst_16 [0] : vector<8x1xf32> to vector<1xf32>
    %41 = vector.shape_cast %40 : vector<1xf32> to vector<1x1xf32>
    %42 = arith.addf %24, %41 : vector<1x1xf32>
    %43 = arith.addf %7, %42 : vector<1x1xf32>
    %c0_17 = arith.constant 0 : index
    %c0_18 = arith.constant 0 : index
    %44 = vector.load %arg5[%c0_17, %c0_18] : memref<1x1xf32, #tpu.memory_space<vmem>>, vector<1x1xf32>
    tpu.vector_store %arg5[%c0_17, %c0_18], %43 {strides = array<i32>} : memref<1x1xf32, #tpu.memory_space<vmem>>, vector<1x1xf32>,
    %c0_i32_19 = arith.constant 0 : i32
    %45 = arith.cmpi eq, %arg0, %c0_i32_19 : i32
    %46 = arith.extui %45 : i1 to i32
    %c0_i32_20 = arith.constant 0 : i32
    %47 = arith.cmpi ne, %46, %c0_i32_20 : i32
    scf.if %47 {
      %c0_21 = arith.constant 0 : index
      %c0_22 = arith.constant 0 : index
      %48 = vector.load %arg5[%c0_21, %c0_22] : memref<1x1xf32, #tpu.memory_space<vmem>>, vector<1x1xf32>
      %cst_23 = arith.constant 6.250000e-02 : f32
      %49 = vector.broadcast %cst_23 : f32 to vector<1x1xf32>
      %50 = arith.mulf %48, %49 : vector<1x1xf32>
      %c0_24 = arith.constant 0 : index
      %c0_25 = arith.constant 0 : index
      %51 = vector.load %arg4[%c0_24, %c0_25] : memref<1x1xf32, #tpu.memory_space<vmem>>, vector<1x1xf32>
      tpu.vector_store %arg4[%c0_24, %c0_25], %50 {strides = array<i32>} : memref<1x1xf32, #tpu.memory_space<vmem>>, vector<1x1xf32>,
    } else {
    }
    return
  }
  func.func @transform_0(%arg0: i32) -> (i32, i32) {
    %c0_i32 = arith.constant 0 : i32
    %c0_i32_0 = arith.constant 0 : i32
    return %arg0, %c0_i32 : i32, i32
  }
  func.func @transform_1(%arg0: i32) -> (i32, i32) {
    %c0_i32 = arith.constant 0 : i32
    %c0_i32_0 = arith.constant 0 : i32
    return %arg0, %c0_i32 : i32, i32
  }
  func.func @transform_2(%arg0: i32) -> (i32, i32) {
    %c0_i32 = arith.constant 0 : i32
    %c0_i32_0 = arith.constant 0 : i32
    return %arg0, %c0_i32 : i32, i32
  }
  func.func @transform_3(%arg0: i32) -> (i32, i32) {
    %c0_i32 = arith.constant 0 : i32
    %c0_i32_0 = arith.constant 0 : i32
    %c0_i32_1 = arith.constant 0 : i32
    return %c0_i32, %c0_i32_0 : i32, i32
  }
}

</mosaic_0001>

<llo_original>
// kernel: tpu_custom_call.1
$region0: #{tpu_custom_call.1}
  #allocation0 [shape = 'u32[]', space=smem, size = 0x4, offset = 0x4, fixed_abs, tag = 'smem constant byte address 0x4 - core index']
  #allocation1 [shape = 'u32[144,128]{1,0:T(1,128)}', space=vmem, size = 0x12000, scoped, tag = 'internal scratch']
  #allocation2 [shape = 'f32[1,1]{1,0:T(1,128)}', space=vmem, size = 0x200, scoped, tag = 'scratch operand']
  %s0 = inlined_call_operand.vmem [shape: f32[8,8], index: 0, kind: input, shape index: {}]
  %s1 = inlined_call_operand.hbm [shape: f32[8,8], index: 1, kind: input, shape index: {}]
  %s2 = inlined_call_operand.vmem [shape: s32[8,1], index: 2, kind: input, shape index: {}]
  %s3 = inlined_call_operand.hbm [shape: f32[1,1], index: 3, kind: output, shape index: {}]
  %s4 = sld [smem:[#allocation0]]
  $region34: #{tpu_custom_call.1} parent=0
    _
  %s6 = ssub.s32 1, %s4
  %s7 = scalar_select 0, %s6, %s4
  $region1: #{tpu_custom_call.1} parent=0
    #allocation3 [shape = 'u8[4096]{0}', space=vmem, size = 0x1000, scoped, tag = 'input window, operand 1, single buffered']
    #allocation4 [shape = 's32[1]{0}', space=sflag, size = 0x4, scoped, tag = 'scoped memory for tpu_custom_call.1']
    #allocation5 [shape = 's32[1]{0}', space=sflag, size = 0x4, scoped, tag = 'scoped memory for tpu_custom_call.1']
    #allocation6 [shape = 'u8[512]{0}', space=vmem, size = 0x400, scoped, tag = 'output window, operand 0, single buffered']
    %8 = vsyncpa [#allocation4], 0
    %9 = vsyncpa [#allocation5], 0
    // Predicated region
    $region2: #{tpu_custom_call.1} parent=1 // pred_check
      _
    $region3: #{tpu_custom_call.1} parent=1 // pred_check_branch
      %11 = sbr.rel (0) target = $region5
    $region4: #{tpu_custom_call.1} parent=1 // pred_region
      _
    $region5: #{tpu_custom_call.1} parent=1 // pred_fallthru
      _
    // Predicated region
    $region6: #{tpu_custom_call.1} parent=1 // pred_check
      _
    $region7: #{tpu_custom_call.1} parent=1 // pred_check_branch
      %13 = sbr.rel (0) target = $region9
    $region8: #{tpu_custom_call.1} parent=1 // pred_region
      %s15 = ssub.s32 128, 128
      %16 = vsyncadd [#allocation4], %s15
      %s18 = sshll.u32 [#allocation3], 4
      %s19 = int_to_ptr.vmem [resolvable:$true] %s18
      %21 = dma.hbm_to_vmem [thread:$0]  %s1, 128, %s19, [#allocation4]
    $region9: #{tpu_custom_call.1} parent=1 // pred_fallthru
      _
    // Predicated region
    $region10: #{tpu_custom_call.1} parent=1 // pred_check
      _
    $region11: #{tpu_custom_call.1} parent=1 // pred_check_branch
      %23 = sbr.rel (0) target = $region13
    $region12: #{tpu_custom_call.1} parent=1 // pred_region
      _
    $region13: #{tpu_custom_call.1} parent=1 // pred_fallthru
      _
    // Predicated region
    $region14: #{tpu_custom_call.1} parent=1 // pred_check
      _
    $region15: #{tpu_custom_call.1} parent=1 // pred_check_branch
      %25 = sbr.rel (0) target = $region17
    $region16: #{tpu_custom_call.1} parent=1 // pred_region
      %26 = dma.done [#allocation4], 128
    $region17: #{tpu_custom_call.1} parent=1 // pred_fallthru
      _
    %p27 = scmp.eq.s32.totalorder 0, 0
    // Predicated region
    $region18: #{tpu_custom_call.1} parent=1 // pred_check
      %p28 = pneg %p27
    $region19: #{tpu_custom_call.1} parent=1 // pred_check_branch
      %30 = sbr.rel (%p28) target = $region21
    $region20: #{tpu_custom_call.1} parent=1 // pred_region
      %vm31 = vcmask 0
      %32 = vst.msk [vmem:[#allocation2] sm:$0x1] %vm31, 0.0
    $region21: #{tpu_custom_call.1} parent=1 // pred_fallthru
      _
    %v33 = vld [vmem:[%s2] sm:$0xff]
    %v34 = vlaneseq
    %v35 = vand.u32 %v34, 127
    %36 = vset.pattern.permute.xlu0 0
    %37 = vperm.xlu0 %36, %v33
    %v38 = vpop.permute.xlu0 %37
    %vm39 = vcmp.eq.s32.totalorder %v35, %v38
    %v40 = vld [vmem:[#allocation2] sm:$0x1]
    %v41 = vld [vmem:[%s0] sm:$0xff]
    %vm42 = vcmask 64512
    %v43 = vsel %vm42, %v41, -inf
    %44 = vmax.xlane.f32.xlu0 %v43
    %v45 = vpop.xlane.xlu0 %44
    %v46 = vsub.f32 %v41, %v45
    %v47 = vmul.f32 %v46, 1.442695
    %v48 = vpow.pop %v47
    %v49 = vsel %vm42, %v48, 0.0
    %50 = vadd.xlane.f32.xlu0 %v49
    %v51 = vpop.xlane.xlu0 %50
    %v52 = vlog2.pop %v51
    %v53 = vmul.f32 %v52, 0.6931472
    %v54 = vadd.f32 %v45, %v53
    %v55 = vsel %vm39, %v41, 0.0
    %v56 = vsel %vm42, %v55, 0.0
    %57 = vadd.xlane.f32.xlu0 %v56
    %v58 = vpop.xlane.xlu0 %57
    %v59 = vsub.f32 %v54, %v58
    %v60 = vrot.slane %v59, 4
    %v61 = vadd.f32 %v59, %v60
    %v62 = vrot.slane %v61, 2
    %v63 = vadd.f32 %v61, %v62
    %v64 = vrot.slane %v63, 1
    %v65 = vadd.f32 %v63, %v64
    %v66 = vld [vmem:[#allocation3] sm:$0xff]
    %v67 = vsel %vm42, %v66, -inf
    %68 = vmax.xlane.f32.xlu0 %v67
    %v69 = vpop.xlane.xlu0 %68
    %v70 = vsub.f32 %v66, %v69
    %v71 = vmul.f32 %v70, 1.442695
    %v72 = vpow.pop %v71
    %v73 = vsel %vm42, %v72, 0.0
    %74 = vadd.xlane.f32.xlu0 %v73
    %v75 = vpop.xlane.xlu0 %74
    %v76 = vlog2.pop %v75
    %v77 = vmul.f32 %v76, 0.6931472
    %v78 = vadd.f32 %v69, %v77
    %v79 = vsel %vm39, %v66, 0.0
    %v80 = vsel %vm42, %v79, 0.0
    %81 = vadd.xlane.f32.xlu0 %v80
    %v82 = vpop.xlane.xlu0 %81
    %v83 = vsub.f32 %v78, %v82
    %v84 = vrot.slane %v83, 4
    %v85 = vadd.f32 %v83, %v84
    %v86 = vrot.slane %v85, 2
    %v87 = vadd.f32 %v85, %v86
    %v88 = vrot.slane %v87, 1
    %v89 = vadd.f32 %v87, %v88
    %v90 = vadd.f32 %v65, %v89
    %v91 = vadd.f32 %v40, %v90
    %vm92 = vcmask 0
    %93 = vst.msk [vmem:[#allocation2] sm:$0x1] %vm92, %v91
    // Predicated region
    $region22: #{tpu_custom_call.1} parent=1 // pred_check
      %p94 = pneg %p27
    $region23: #{tpu_custom_call.1} parent=1 // pred_check_branch
      %96 = sbr.rel (%p94) target = $region25
    $region24: #{tpu_custom_call.1} parent=1 // pred_region
      %v97 = vld [vmem:[#allocation2] sm:$0x1]
      %v98 = vmul.f32 %v97, 0.0625
      %99 = vst.msk [vmem:[#allocation6] sm:$0x1] %vm92, %v98
    $region25: #{tpu_custom_call.1} parent=1 // pred_fallthru
      _
    // Predicated region
    $region26: #{tpu_custom_call.1} parent=1 // pred_check
      _
    $region27: #{tpu_custom_call.1} parent=1 // pred_check_branch
      %101 = sbr.rel (0) target = $region29
    $region28: #{tpu_custom_call.1} parent=1 // pred_region
      %s103 = ssub.s32 16, 16
      %104 = vsyncadd [#allocation5], %s103
      %s106 = sshll.u32 [#allocation6], 4
      %s107 = int_to_ptr.vmem [resolvable:$true] %s106
      %109 = dma.vmem_to_hbm [thread:$0]  %s107, 16, %s3, [#allocation5]
    $region29: #{tpu_custom_call.1} parent=1 // pred_fallthru
      _
    // Predicated region
    $region30: #{tpu_custom_call.1} parent=1 // pred_check
      _
    $region31: #{tpu_custom_call.1} parent=1 // pred_check_branch
      %111 = sbr.rel (0) target = $region33
    $region32: #{tpu_custom_call.1} parent=1 // pred_region
      %112 = dma.done [#allocation5], 16
    $region33: #{tpu_custom_call.1} parent=1 // pred_fallthru
      _
    %113 = vsyncpa [#allocation4], 1
    %114 = vsyncpa [#allocation5], 1

</llo_original>
